<compile_context>
chip_gen: v6e
topology: v6e:2x2x1
jax: 0.10.0
libtpu: 0.0.40
codegen_flags: <defaults>
</compile_context>

<pallas_src>
import functools

import jax
import jax.numpy as jnp
import numpy as np
from jax.experimental import pallas as pl
from jax.experimental.pallas import tpu as pltpu


# ---------------------- fused conv + BN + ReLU kernel -------------------------
def _fused_conv_bn_relu_kernel(x_ref, w_ref, g_ref, b_ref, o_ref,
                               xpad_ref, pmat_ref, yc_ref, *,
                               N, Cin, Cout, H, W, Hp, Wp, Ho, Wo, KH, KW,
                               padding, eps, use_bn, use_relu, matmul_dtype):
    """Single invocation (grid=()); all refs live whole in VMEM.

    x_ref:    (N*Cin, H*W)            unpadded input, spatial flattened on lanes
    w_ref:    (N*Cout, KH*KW*N*Cin)   block-diagonal weights (tap-major cols)
    g_ref:    (Cout, 1)               BN gamma
    b_ref:    (Cout, 1)               BN beta
    o_ref:    (N*Cout, Ho*Wo)         compact conv+BN+ReLU output (lane-dense)

    xpad_ref: (N*Cin, Hp*Wp + KW-1)   zero-padded images, flattened, + tap guard
    pmat_ref: (KH*KW*N*Cin, Ho*Wp)    im2col matrix (padded-width columns)
    yc_ref:   (N*Cout, Ho*Wo)         compacted conv result (junk cols dropped)
    """
    NCin = N * Cin
    M = Ho * Wp          # padded-width column count (contains KW-1 junk/row)

    # ---- 1. zero-pad inside the kernel (no wrapper-side jnp.pad round trip) --
    xpad_ref[...] = jnp.zeros(xpad_ref.shape, dtype=xpad_ref.dtype)
    for h in range(H):
        dst = (h + padding) * Wp + padding
        xpad_ref[:, dst:dst + W] = x_ref[:, h * W:(h + 1) * W]

    # ---- 2. im2col: one lane slice per tap for the WHOLE batch, stored with --
    # ----    aligned sublane offsets into a persistent VMEM scratch          --
    for kh in range(KH):
        for kw in range(KW):
            t = kh * KW + kw
            off = kh * Wp + kw
            pmat_ref[t * NCin:(t + 1) * NCin, :] = xpad_ref[:, off:off + M]

    # ---- 3. ONE MXU matmul for the whole batch (block-diagonal weights) ------
    wmat = w_ref[...].astype(matmul_dtype)
    pmat = pmat_ref[...].astype(matmul_dtype)
    conv = jnp.dot(wmat, pmat, preferred_element_type=jnp.float32)  # (N*Cout, M)

    # ---- 4. compact: drop the KW-1 junk columns of each padded-width row -----
    for ho in range(Ho):
        yc_ref[:, ho * Wo:(ho + 1) * Wo] = conv[:, ho * Wp:ho * Wp + Wo]

    # per-image views (aligned sublane slices of the compact result)
    ys = [yc_ref[n * Cout:(n + 1) * Cout, :] for n in range(N)]

    # ---- 5. BatchNorm2d (training-mode batch stats), one-pass, mask-free -----
    scale = None
    shift = None
    if use_bn:
        inv_cnt = 1.0 / float(N * Ho * Wo)
        s1 = None
        s2 = None
        for y in ys:
            a = jnp.sum(y, axis=1, keepdims=True)            # (Cout, 1)
            sq = jnp.sum(y * y, axis=1, keepdims=True)       # (Cout, 1)
            s1 = a if s1 is None else s1 + a
            s2 = sq if s2 is None else s2 + sq
        mean = s1 * inv_cnt
        var = s2 * inv_cnt - mean * mean                     # biased batch var
        inv_std = jax.lax.rsqrt(var + eps)                   # EUP slot, ~free
        scale = inv_std * g_ref[...]
        shift = b_ref[...] - mean * scale

    # ---- 6. affine + ReLU + lane-dense stores ---------------------------------
    for n in range(N):
        y = ys[n]
        if use_bn:
            y = y * scale + shift
        if use_relu:
            y = jnp.maximum(y, 0.0)
        o_ref[n * Cout:(n + 1) * Cout, :] = y.astype(o_ref.dtype)


# --------------------------------- wrapper ------------------------------------
def basic_conv_forward(x_nchw, weight_oihw, gamma, beta, *,
                       stride=1, padding=0, eps=1e-5, bn=True, relu=True,
                       matmul_dtype=jnp.float32):
    """Forward of BasicConv. NCHW in / NCHW out. stride=1, dilation=1, groups=1."""
    # TODO(synk): stride>1 / dilation>1 / groups>1 and the BN running-stat
    # update (momentum=0.01 buffers) are not implemented; only the
    # training-mode functional forward output is produced.
    assert stride == 1, "only stride=1 is implemented"
    N, Cin, H, W = x_nchw.shape
    Cout, Cin_w, KH, KW = weight_oihw.shape
    assert Cin_w == Cin, "groups != 1 is not implemented"

    Hp, Wp = H + 2 * padding, W + 2 * padding
    Ho, Wo = Hp - KH + 1, Wp - KW + 1
    M = Ho * Wp
    Mc = Ho * Wo
    NCin = N * Cin
    LP = Hp * Wp + (KW - 1)     # flat padded length + tap-overrun guard

    # Contiguous (free) reshape only -- no pad, no transpose on activations.
    x_flat = x_nchw.astype(jnp.float32).reshape(NCin, H * W)

    # Block-diagonal weights so ONE matmul covers the whole batch:
    #   w_blk[n*Cout+co, (kh*KW+kw)*N*Cin + n'*Cin + ci] = eye[n,n'] * w[co,ci,kh,kw]
    # Built on the tiny weight tensor only (O(N^2*Cout*Cin*KH*KW) bytes).
    w_blk = jnp.einsum('nm,oikl->noklmi',
                       jnp.eye(N, dtype=jnp.float32),
                       weight_oihw.astype(jnp.float32)
                       ).reshape(N * Cout, KH * KW * N * Cin)
    g2 = gamma.astype(jnp.float32).reshape(Cout, 1)
    b2 = beta.astype(jnp.float32).reshape(Cout, 1)

    kern = functools.partial(
        _fused_conv_bn_relu_kernel,
        N=N, Cin=Cin, Cout=Cout, H=H, W=W, Hp=Hp, Wp=Wp, Ho=Ho, Wo=Wo,
        KH=KH, KW=KW, padding=padding, eps=eps,
        use_bn=bn, use_relu=relu, matmul_dtype=matmul_dtype)

    flops = 2 * (N * Cout) * (KH * KW * N * Cin) * M + 8 * N * Cout * Mc
    bytes_accessed = 4 * (x_flat.size + w_blk.size + g2.size + b2.size
                          + N * Cout * Mc)
    cost = pl.CostEstimate(flops=flops, transcendentals=Cout,
                           bytes_accessed=bytes_accessed)

    vmem = pl.BlockSpec(memory_space=pltpu.MemorySpace.VMEM)
    out = pl.pallas_call(
        kern,
        out_shape=jax.ShapeDtypeStruct((N * Cout, Mc), jnp.float32),
        in_specs=[vmem, vmem, vmem, vmem],
        out_specs=vmem,
        scratch_shapes=[
            pltpu.VMEM((NCin, LP), jnp.float32),              # padded images
            pltpu.VMEM((KH * KW * NCin, M), jnp.float32),     # im2col matrix
            pltpu.VMEM((N * Cout, Mc), jnp.float32),          # compact conv
        ],
        cost_estimate=cost,
    )(x_flat, w_blk, g2, b2)

    # Contiguous (free) reshape back to NCHW -- no strided HBM slice.
    return out.reshape(N, Cout, Ho, Wo)


# -------------------------------- reference -----------------------------------
def _reference(x_nchw, weight_oihw, gamma, beta, *, padding, eps):
    conv = jax.lax.conv_general_dilated(
        x_nchw, weight_oihw, window_strides=(1, 1),
        padding=((padding, padding), (padding, padding)),
        dimension_numbers=("NCHW", "OIHW", "NCHW"))
    mean = jnp.mean(conv, axis=(0, 2, 3), keepdims=True)
    var = jnp.mean(jnp.square(conv - mean), axis=(0, 2, 3), keepdims=True)
    y = (conv - mean) * jax.lax.rsqrt(var + eps)
    y = y * gamma.reshape(1, -1, 1, 1) + beta.reshape(1, -1, 1, 1)
    return jnp.maximum(y, 0.0)


if __name__ == "__main__":
    # BasicConv(in_planes=4, out_planes=8, kernel_size=3, padding=1) defaults:
    # stride=1, dilation=1, groups=1, bias=False, bn=True, relu=True
    N, Cin, Cout, H, W, K, PAD = 2, 4, 8, 16, 16, 3, 1
    EPS = 1e-5

    key = jax.random.PRNGKey(0)
    kx, kw_, kg, kb = jax.random.split(key, 4)
    x = jax.random.normal(kx, (N, Cin, H, W), dtype=jnp.float32)
    weight = 0.1 * jax.random.normal(kw_, (Cout, Cin, K, K), dtype=jnp.float32)
    gamma = 1.0 + 0.1 * jax.random.normal(kg, (Cout,), dtype=jnp.float32)
    beta = 0.1 * jax.random.normal(kb, (Cout,), dtype=jnp.float32)

    out = basic_conv_forward(x, weight, gamma, beta, padding=PAD, eps=EPS,
                             bn=True, relu=True)
    out = jax.block_until_ready(out)

    ref = _reference(x, weight, gamma, beta, padding=PAD, eps=EPS)
    np.testing.assert_allclose(np.asarray(out), np.asarray(ref),
                               rtol=1e-4, atol=1e-4)
    print("KERNEL_OK")
</pallas_src>

<mosaic_0001>
module attributes {stable_mosaic.version = 11 : i64} {
  func.func @_fused_conv_bn_relu_kernel(%arg0: memref<8x256xf32, #tpu.memory_space<vmem>>, %arg1: memref<16x72xf32, #tpu.memory_space<vmem>>, %arg2: memref<8x1xf32, #tpu.memory_space<vmem>>, %arg3: memref<8x1xf32, #tpu.memory_space<vmem>>, %arg4: memref<16x256xf32, #tpu.memory_space<vmem>>, %arg5: memref<8x326xf32, #tpu.memory_space<vmem>>, %arg6: memref<72x288xf32, #tpu.memory_space<vmem>>, %arg7: memref<16x256xf32, #tpu.memory_space<vmem>>) attributes {dimension_semantics = [], scalar_prefetch = 0 : i64, scratch_operands = 3 : i64, tpu.core_type = #tpu.core_type<tc>} {
    %cst = arith.constant 0.000000e+00 : f32
    %0 = vector.broadcast %cst : f32 to vector<8x326xf32>
    %c0 = arith.constant 0 : index
    %c0_0 = arith.constant 0 : index
    %1 = vector.load %arg5[%c0, %c0_0] : memref<8x326xf32, #tpu.memory_space<vmem>>, vector<8x326xf32>
    tpu.vector_store %arg5[%c0, %c0_0], %0 {strides = array<i32>} : memref<8x326xf32, #tpu.memory_space<vmem>>, vector<8x326xf32>,
    %c0_1 = arith.constant 0 : index
    %c0_2 = arith.constant 0 : index
    %2 = vector.load %arg0[%c0_1, %c0_2] : memref<8x256xf32, #tpu.memory_space<vmem>>, vector<8x16xf32>
    %c0_3 = arith.constant 0 : index
    %c19 = arith.constant 19 : index
    %3 = vector.load %arg5[%c0_3, %c19] : memref<8x326xf32, #tpu.memory_space<vmem>>, vector<8x16xf32>
    tpu.vector_store %arg5[%c0_3, %c19], %2 {strides = array<i32>} : memref<8x326xf32, #tpu.memory_space<vmem>>, vector<8x16xf32>,
    %c0_4 = arith.constant 0 : index
    %c16 = arith.constant 16 : index
    %4 = vector.load %arg0[%c0_4, %c16] : memref<8x256xf32, #tpu.memory_space<vmem>>, vector<8x16xf32>
    %c0_5 = arith.constant 0 : index
    %c37 = arith.constant 37 : index
    %5 = vector.load %arg5[%c0_5, %c37] : memref<8x326xf32, #tpu.memory_space<vmem>>, vector<8x16xf32>
    tpu.vector_store %arg5[%c0_5, %c37], %4 {strides = array<i32>} : memref<8x326xf32, #tpu.memory_space<vmem>>, vector<8x16xf32>,
    %c0_6 = arith.constant 0 : index
    %c32 = arith.constant 32 : index
    %6 = vector.load %arg0[%c0_6, %c32] : memref<8x256xf32, #tpu.memory_space<vmem>>, vector<8x16xf32>
    %c0_7 = arith.constant 0 : index
    %c55 = arith.constant 55 : index
    %7 = vector.load %arg5[%c0_7, %c55] : memref<8x326xf32, #tpu.memory_space<vmem>>, vector<8x16xf32>
    tpu.vector_store %arg5[%c0_7, %c55], %6 {strides = array<i32>} : memref<8x326xf32, #tpu.memory_space<vmem>>, vector<8x16xf32>,
    %c0_8 = arith.constant 0 : index
    %c48 = arith.constant 48 : index
    %8 = vector.load %arg0[%c0_8, %c48] : memref<8x256xf32, #tpu.memory_space<vmem>>, vector<8x16xf32>
    %c0_9 = arith.constant 0 : index
    %c73 = arith.constant 73 : index
    %9 = vector.load %arg5[%c0_9, %c73] : memref<8x326xf32, #tpu.memory_space<vmem>>, vector<8x16xf32>
    tpu.vector_store %arg5[%c0_9, %c73], %8 {strides = array<i32>} : memref<8x326xf32, #tpu.memory_space<vmem>>, vector<8x16xf32>,
    %c0_10 = arith.constant 0 : index
    %c64 = arith.constant 64 : index
    %10 = vector.load %arg0[%c0_10, %c64] : memref<8x256xf32, #tpu.memory_space<vmem>>, vector<8x16xf32>
    %c0_11 = arith.constant 0 : index
    %c91 = arith.constant 91 : index
    %11 = vector.load %arg5[%c0_11, %c91] : memref<8x326xf32, #tpu.memory_space<vmem>>, vector<8x16xf32>
    tpu.vector_store %arg5[%c0_11, %c91], %10 {strides = array<i32>} : memref<8x326xf32, #tpu.memory_space<vmem>>, vector<8x16xf32>,
    %c0_12 = arith.constant 0 : index
    %c80 = arith.constant 80 : index
    %12 = vector.load %arg0[%c0_12, %c80] : memref<8x256xf32, #tpu.memory_space<vmem>>, vector<8x16xf32>
    %c0_13 = arith.constant 0 : index
    %c109 = arith.constant 109 : index
    %13 = vector.load %arg5[%c0_13, %c109] : memref<8x326xf32, #tpu.memory_space<vmem>>, vector<8x16xf32>
    tpu.vector_store %arg5[%c0_13, %c109], %12 {strides = array<i32>} : memref<8x326xf32, #tpu.memory_space<vmem>>, vector<8x16xf32>,
    %c0_14 = arith.constant 0 : index
    %c96 = arith.constant 96 : index
    %14 = vector.load %arg0[%c0_14, %c96] : memref<8x256xf32, #tpu.memory_space<vmem>>, vector<8x16xf32>
    %c0_15 = arith.constant 0 : index
    %c127 = arith.constant 127 : index
    %15 = vector.load %arg5[%c0_15, %c127] : memref<8x326xf32, #tpu.memory_space<vmem>>, vector<8x16xf32>
    tpu.vector_store %arg5[%c0_15, %c127], %14 {strides = array<i32>} : memref<8x326xf32, #tpu.memory_space<vmem>>, vector<8x16xf32>,
    %c0_16 = arith.constant 0 : index
    %c112 = arith.constant 112 : index
    %16 = vector.load %arg0[%c0_16, %c112] : memref<8x256xf32, #tpu.memory_space<vmem>>, vector<8x16xf32>
    %c0_17 = arith.constant 0 : index
    %c145 = arith.constant 145 : index
    %17 = vector.load %arg5[%c0_17, %c145] : memref<8x326xf32, #tpu.memory_space<vmem>>, vector<8x16xf32>
    tpu.vector_store %arg5[%c0_17, %c145], %16 {strides = array<i32>} : memref<8x326xf32, #tpu.memory_space<vmem>>, vector<8x16xf32>,
    %c0_18 = arith.constant 0 : index
    %c128 = arith.constant 128 : index
    %18 = vector.load %arg0[%c0_18, %c128] : memref<8x256xf32, #tpu.memory_space<vmem>>, vector<8x16xf32>
    %c0_19 = arith.constant 0 : index
    %c163 = arith.constant 163 : index
    %19 = vector.load %arg5[%c0_19, %c163] : memref<8x326xf32, #tpu.memory_space<vmem>>, vector<8x16xf32>
    tpu.vector_store %arg5[%c0_19, %c163], %18 {strides = array<i32>} : memref<8x326xf32, #tpu.memory_space<vmem>>, vector<8x16xf32>,
    %c0_20 = arith.constant 0 : index
    %c144 = arith.constant 144 : index
    %20 = vector.load %arg0[%c0_20, %c144] : memref<8x256xf32, #tpu.memory_space<vmem>>, vector<8x16xf32>
    %c0_21 = arith.constant 0 : index
    %c181 = arith.constant 181 : index
    %21 = vector.load %arg5[%c0_21, %c181] : memref<8x326xf32, #tpu.memory_space<vmem>>, vector<8x16xf32>
    tpu.vector_store %arg5[%c0_21, %c181], %20 {strides = array<i32>} : memref<8x326xf32, #tpu.memory_space<vmem>>, vector<8x16xf32>,
    %c0_22 = arith.constant 0 : index
    %c160 = arith.constant 160 : index
    %22 = vector.load %arg0[%c0_22, %c160] : memref<8x256xf32, #tpu.memory_space<vmem>>, vector<8x16xf32>
    %c0_23 = arith.constant 0 : index
    %c199 = arith.constant 199 : index
    %23 = vector.load %arg5[%c0_23, %c199] : memref<8x326xf32, #tpu.memory_space<vmem>>, vector<8x16xf32>
    tpu.vector_store %arg5[%c0_23, %c199], %22 {strides = array<i32>} : memref<8x326xf32, #tpu.memory_space<vmem>>, vector<8x16xf32>,
    %c0_24 = arith.constant 0 : index
    %c176 = arith.constant 176 : index
    %24 = vector.load %arg0[%c0_24, %c176] : memref<8x256xf32, #tpu.memory_space<vmem>>, vector<8x16xf32>
    %c0_25 = arith.constant 0 : index
    %c217 = arith.constant 217 : index
    %25 = vector.load %arg5[%c0_25, %c217] : memref<8x326xf32, #tpu.memory_space<vmem>>, vector<8x16xf32>
    tpu.vector_store %arg5[%c0_25, %c217], %24 {strides = array<i32>} : memref<8x326xf32, #tpu.memory_space<vmem>>, vector<8x16xf32>,
    %c0_26 = arith.constant 0 : index
    %c192 = arith.constant 192 : index
    %26 = vector.load %arg0[%c0_26, %c192] : memref<8x256xf32, #tpu.memory_space<vmem>>, vector<8x16xf32>
    %c0_27 = arith.constant 0 : index
    %c235 = arith.constant 235 : index
    %27 = vector.load %arg5[%c0_27, %c235] : memref<8x326xf32, #tpu.memory_space<vmem>>, vector<8x16xf32>
    tpu.vector_store %arg5[%c0_27, %c235], %26 {strides = array<i32>} : memref<8x326xf32, #tpu.memory_space<vmem>>, vector<8x16xf32>,
    %c0_28 = arith.constant 0 : index
    %c208 = arith.constant 208 : index
    %28 = vector.load %arg0[%c0_28, %c208] : memref<8x256xf32, #tpu.memory_space<vmem>>, vector<8x16xf32>
    %c0_29 = arith.constant 0 : index
    %c253 = arith.constant 253 : index
    %29 = vector.load %arg5[%c0_29, %c253] : memref<8x326xf32, #tpu.memory_space<vmem>>, vector<8x16xf32>
    tpu.vector_store %arg5[%c0_29, %c253], %28 {strides = array<i32>} : memref<8x326xf32, #tpu.memory_space<vmem>>, vector<8x16xf32>,
    %c0_30 = arith.constant 0 : index
    %c224 = arith.constant 224 : index
    %30 = vector.load %arg0[%c0_30, %c224] : memref<8x256xf32, #tpu.memory_space<vmem>>, vector<8x16xf32>
    %c0_31 = arith.constant 0 : index
    %c271 = arith.constant 271 : index
    %31 = vector.load %arg5[%c0_31, %c271] : memref<8x326xf32, #tpu.memory_space<vmem>>, vector<8x16xf32>
    tpu.vector_store %arg5[%c0_31, %c271], %30 {strides = array<i32>} : memref<8x326xf32, #tpu.memory_space<vmem>>, vector<8x16xf32>,
    %c0_32 = arith.constant 0 : index
    %c240 = arith.constant 240 : index
    %32 = vector.load %arg0[%c0_32, %c240] : memref<8x256xf32, #tpu.memory_space<vmem>>, vector<8x16xf32>
    %c0_33 = arith.constant 0 : index
    %c289 = arith.constant 289 : index
    %33 = vector.load %arg5[%c0_33, %c289] : memref<8x326xf32, #tpu.memory_space<vmem>>, vector<8x16xf32>
    tpu.vector_store %arg5[%c0_33, %c289], %32 {strides = array<i32>} : memref<8x326xf32, #tpu.memory_space<vmem>>, vector<8x16xf32>,
    %c0_34 = arith.constant 0 : index
    %c0_35 = arith.constant 0 : index
    %34 = vector.load %arg5[%c0_34, %c0_35] : memref<8x326xf32, #tpu.memory_space<vmem>>, vector<8x288xf32>
    %c0_36 = arith.constant 0 : index
    %c0_37 = arith.constant 0 : index
    %35 = vector.load %arg6[%c0_36, %c0_37] : memref<72x288xf32, #tpu.memory_space<vmem>>, vector<8x288xf32>
    tpu.vector_store %arg6[%c0_36, %c0_37], %34 {strides = array<i32>} : memref<72x288xf32, #tpu.memory_space<vmem>>, vector<8x288xf32>,
    %c0_38 = arith.constant 0 : index
    %c1 = arith.constant 1 : index
    %36 = vector.load %arg5[%c0_38, %c1] : memref<8x326xf32, #tpu.memory_space<vmem>>, vector<8x288xf32>
    %c8 = arith.constant 8 : index
    %c0_39 = arith.constant 0 : index
    %37 = vector.load %arg6[%c8, %c0_39] : memref<72x288xf32, #tpu.memory_space<vmem>>, vector<8x288xf32>
    tpu.vector_store %arg6[%c8, %c0_39], %36 {strides = array<i32>} : memref<72x288xf32, #tpu.memory_space<vmem>>, vector<8x288xf32>,
    %c0_40 = arith.constant 0 : index
    %c2 = arith.constant 2 : index
    %38 = vector.load %arg5[%c0_40, %c2] : memref<8x326xf32, #tpu.memory_space<vmem>>, vector<8x288xf32>
    %c16_41 = arith.constant 16 : index
    %c0_42 = arith.constant 0 : index
    %39 = vector.load %arg6[%c16_41, %c0_42] : memref<72x288xf32, #tpu.memory_space<vmem>>, vector<8x288xf32>
    tpu.vector_store %arg6[%c16_41, %c0_42], %38 {strides = array<i32>} : memref<72x288xf32, #tpu.memory_space<vmem>>, vector<8x288xf32>,
    %c0_43 = arith.constant 0 : index
    %c18 = arith.constant 18 : index
    %40 = vector.load %arg5[%c0_43, %c18] : memref<8x326xf32, #tpu.memory_space<vmem>>, vector<8x288xf32>
    %c24 = arith.constant 24 : index
    %c0_44 = arith.constant 0 : index
    %41 = vector.load %arg6[%c24, %c0_44] : memref<72x288xf32, #tpu.memory_space<vmem>>, vector<8x288xf32>
    tpu.vector_store %arg6[%c24, %c0_44], %40 {strides = array<i32>} : memref<72x288xf32, #tpu.memory_space<vmem>>, vector<8x288xf32>,
    %c0_45 = arith.constant 0 : index
    %c19_46 = arith.constant 19 : index
    %42 = vector.load %arg5[%c0_45, %c19_46] : memref<8x326xf32, #tpu.memory_space<vmem>>, vector<8x288xf32>
    %c32_47 = arith.constant 32 : index
    %c0_48 = arith.constant 0 : index
    %43 = vector.load %arg6[%c32_47, %c0_48] : memref<72x288xf32, #tpu.memory_space<vmem>>, vector<8x288xf32>
    tpu.vector_store %arg6[%c32_47, %c0_48], %42 {strides = array<i32>} : memref<72x288xf32, #tpu.memory_space<vmem>>, vector<8x288xf32>,
    %c0_49 = arith.constant 0 : index
    %c20 = arith.constant 20 : index
    %44 = vector.load %arg5[%c0_49, %c20] : memref<8x326xf32, #tpu.memory_space<vmem>>, vector<8x288xf32>
    %c40 = arith.constant 40 : index
    %c0_50 = arith.constant 0 : index
    %45 = vector.load %arg6[%c40, %c0_50] : memref<72x288xf32, #tpu.memory_space<vmem>>, vector<8x288xf32>
    tpu.vector_store %arg6[%c40, %c0_50], %44 {strides = array<i32>} : memref<72x288xf32, #tpu.memory_space<vmem>>, vector<8x288xf32>,
    %c0_51 = arith.constant 0 : index
    %c36 = arith.constant 36 : index
    %46 = vector.load %arg5[%c0_51, %c36] : memref<8x326xf32, #tpu.memory_space<vmem>>, vector<8x288xf32>
    %c48_52 = arith.constant 48 : index
    %c0_53 = arith.constant 0 : index
    %47 = vector.load %arg6[%c48_52, %c0_53] : memref<72x288xf32, #tpu.memory_space<vmem>>, vector<8x288xf32>
    tpu.vector_store %arg6[%c48_52, %c0_53], %46 {strides = array<i32>} : memref<72x288xf32, #tpu.memory_space<vmem>>, vector<8x288xf32>,
    %c0_54 = arith.constant 0 : index
    %c37_55 = arith.constant 37 : index
    %48 = vector.load %arg5[%c0_54, %c37_55] : memref<8x326xf32, #tpu.memory_space<vmem>>, vector<8x288xf32>
    %c56 = arith.constant 56 : index
    %c0_56 = arith.constant 0 : index
    %49 = vector.load %arg6[%c56, %c0_56] : memref<72x288xf32, #tpu.memory_space<vmem>>, vector<8x288xf32>
    tpu.vector_store %arg6[%c56, %c0_56], %48 {strides = array<i32>} : memref<72x288xf32, #tpu.memory_space<vmem>>, vector<8x288xf32>,
    %c0_57 = arith.constant 0 : index
    %c38 = arith.constant 38 : index
    %50 = vector.load %arg5[%c0_57, %c38] : memref<8x326xf32, #tpu.memory_space<vmem>>, vector<8x288xf32>
    %c64_58 = arith.constant 64 : index
    %c0_59 = arith.constant 0 : index
    %51 = vector.load %arg6[%c64_58, %c0_59] : memref<72x288xf32, #tpu.memory_space<vmem>>, vector<8x288xf32>
    tpu.vector_store %arg6[%c64_58, %c0_59], %50 {strides = array<i32>} : memref<72x288xf32, #tpu.memory_space<vmem>>, vector<8x288xf32>,
    %c0_60 = arith.constant 0 : index
    %c0_61 = arith.constant 0 : index
    %52 = vector.load %arg1[%c0_60, %c0_61] : memref<16x72xf32, #tpu.memory_space<vmem>>, vector<16x72xf32>
    %c0_62 = arith.constant 0 : index
    %c0_63 = arith.constant 0 : index
    %53 = vector.load %arg6[%c0_62, %c0_63] : memref<72x288xf32, #tpu.memory_space<vmem>>, vector<72x288xf32>
    %cst_64 = arith.constant dense<0.000000e+00> : vector<16x288xf32>
    %54 = tpu.matmul %52, %53, %cst_64 {dimension_numbers = #tpu.dot_dimension_numbers<[1], [0], [0], [1], [0, 0, 1, 1], [], []>} : vector<16x72xf32>, vector<72x288xf32>, vector<16x288xf32> -> vector<16x288xf32>
    %55 = vector.extract_strided_slice %54 {offsets = [0, 0], sizes = [16, 16], strides = [1, 1]} : vector<16x288xf32> to vector<16x16xf32>
    %c0_65 = arith.constant 0 : index
    %c0_66 = arith.constant 0 : index
    %56 = vector.load %arg7[%c0_65, %c0_66] : memref<16x256xf32, #tpu.memory_space<vmem>>, vector<16x16xf32>
    tpu.vector_store %arg7[%c0_65, %c0_66], %55 {strides = array<i32>} : memref<16x256xf32, #tpu.memory_space<vmem>>, vector<16x16xf32>,
    %57 = vector.extract_strided_slice %54 {offsets = [0, 18], sizes = [16, 16], strides = [1, 1]} : vector<16x288xf32> to vector<16x16xf32>
    %c0_67 = arith.constant 0 : index
    %c16_68 = arith.constant 16 : index
    %58 = vector.load %arg7[%c0_67, %c16_68] : memref<16x256xf32, #tpu.memory_space<vmem>>, vector<16x16xf32>
    tpu.vector_store %arg7[%c0_67, %c16_68], %57 {strides = array<i32>} : memref<16x256xf32, #tpu.memory_space<vmem>>, vector<16x16xf32>,
    %59 = vector.extract_strided_slice %54 {offsets = [0, 36], sizes = [16, 16], strides = [1, 1]} : vector<16x288xf32> to vector<16x16xf32>
    %c0_69 = arith.constant 0 : index
    %c32_70 = arith.constant 32 : index
    %60 = vector.load %arg7[%c0_69, %c32_70] : memref<16x256xf32, #tpu.memory_space<vmem>>, vector<16x16xf32>
    tpu.vector_store %arg7[%c0_69, %c32_70], %59 {strides = array<i32>} : memref<16x256xf32, #tpu.memory_space<vmem>>, vector<16x16xf32>,
    %61 = vector.extract_strided_slice %54 {offsets = [0, 54], sizes = [16, 16], strides = [1, 1]} : vector<16x288xf32> to vector<16x16xf32>
    %c0_71 = arith.constant 0 : index
    %c48_72 = arith.constant 48 : index
    %62 = vector.load %arg7[%c0_71, %c48_72] : memref<16x256xf32, #tpu.memory_space<vmem>>, vector<16x16xf32>
    tpu.vector_store %arg7[%c0_71, %c48_72], %61 {strides = array<i32>} : memref<16x256xf32, #tpu.memory_space<vmem>>, vector<16x16xf32>,
    %63 = vector.extract_strided_slice %54 {offsets = [0, 72], sizes = [16, 16], strides = [1, 1]} : vector<16x288xf32> to vector<16x16xf32>
    %c0_73 = arith.constant 0 : index
    %c64_74 = arith.constant 64 : index
    %64 = vector.load %arg7[%c0_73, %c64_74] : memref<16x256xf32, #tpu.memory_space<vmem>>, vector<16x16xf32>
    tpu.vector_store %arg7[%c0_73, %c64_74], %63 {strides = array<i32>} : memref<16x256xf32, #tpu.memory_space<vmem>>, vector<16x16xf32>,
    %65 = vector.extract_strided_slice %54 {offsets = [0, 90], sizes = [16, 16], strides = [1, 1]} : vector<16x288xf32> to vector<16x16xf32>
    %c0_75 = arith.constant 0 : index
    %c80_76 = arith.constant 80 : index
    %66 = vector.load %arg7[%c0_75, %c80_76] : memref<16x256xf32, #tpu.memory_space<vmem>>, vector<16x16xf32>
    tpu.vector_store %arg7[%c0_75, %c80_76], %65 {strides = array<i32>} : memref<16x256xf32, #tpu.memory_space<vmem>>, vector<16x16xf32>,
    %67 = vector.extract_strided_slice %54 {offsets = [0, 108], sizes = [16, 16], strides = [1, 1]} : vector<16x288xf32> to vector<16x16xf32>
    %c0_77 = arith.constant 0 : index
    %c96_78 = arith.constant 96 : index
    %68 = vector.load %arg7[%c0_77, %c96_78] : memref<16x256xf32, #tpu.memory_space<vmem>>, vector<16x16xf32>
    tpu.vector_store %arg7[%c0_77, %c96_78], %67 {strides = array<i32>} : memref<16x256xf32, #tpu.memory_space<vmem>>, vector<16x16xf32>,
    %69 = vector.extract_strided_slice %54 {offsets = [0, 126], sizes = [16, 16], strides = [1, 1]} : vector<16x288xf32> to vector<16x16xf32>
    %c0_79 = arith.constant 0 : index
    %c112_80 = arith.constant 112 : index
    %70 = vector.load %arg7[%c0_79, %c112_80] : memref<16x256xf32, #tpu.memory_space<vmem>>, vector<16x16xf32>
    tpu.vector_store %arg7[%c0_79, %c112_80], %69 {strides = array<i32>} : memref<16x256xf32, #tpu.memory_space<vmem>>, vector<16x16xf32>,
    %71 = vector.extract_strided_slice %54 {offsets = [0, 144], sizes = [16, 16], strides = [1, 1]} : vector<16x288xf32> to vector<16x16xf32>
    %c0_81 = arith.constant 0 : index
    %c128_82 = arith.constant 128 : index
    %72 = vector.load %arg7[%c0_81, %c128_82] : memref<16x256xf32, #tpu.memory_space<vmem>>, vector<16x16xf32>
    tpu.vector_store %arg7[%c0_81, %c128_82], %71 {strides = array<i32>} : memref<16x256xf32, #tpu.memory_space<vmem>>, vector<16x16xf32>,
    %73 = vector.extract_strided_slice %54 {offsets = [0, 162], sizes = [16, 16], strides = [1, 1]} : vector<16x288xf32> to vector<16x16xf32>
    %c0_83 = arith.constant 0 : index
    %c144_84 = arith.constant 144 : index
    %74 = vector.load %arg7[%c0_83, %c144_84] : memref<16x256xf32, #tpu.memory_space<vmem>>, vector<16x16xf32>
    tpu.vector_store %arg7[%c0_83, %c144_84], %73 {strides = array<i32>} : memref<16x256xf32, #tpu.memory_space<vmem>>, vector<16x16xf32>,
    %75 = vector.extract_strided_slice %54 {offsets = [0, 180], sizes = [16, 16], strides = [1, 1]} : vector<16x288xf32> to vector<16x16xf32>
    %c0_85 = arith.constant 0 : index
    %c160_86 = arith.constant 160 : index
    %76 = vector.load %arg7[%c0_85, %c160_86] : memref<16x256xf32, #tpu.memory_space<vmem>>, vector<16x16xf32>
    tpu.vector_store %arg7[%c0_85, %c160_86], %75 {strides = array<i32>} : memref<16x256xf32, #tpu.memory_space<vmem>>, vector<16x16xf32>,
    %77 = vector.extract_strided_slice %54 {offsets = [0, 198], sizes = [16, 16], strides = [1, 1]} : vector<16x288xf32> to vector<16x16xf32>
    %c0_87 = arith.constant 0 : index
    %c176_88 = arith.constant 176 : index
    %78 = vector.load %arg7[%c0_87, %c176_88] : memref<16x256xf32, #tpu.memory_space<vmem>>, vector<16x16xf32>
    tpu.vector_store %arg7[%c0_87, %c176_88], %77 {strides = array<i32>} : memref<16x256xf32, #tpu.memory_space<vmem>>, vector<16x16xf32>,
    %79 = vector.extract_strided_slice %54 {offsets = [0, 216], sizes = [16, 16], strides = [1, 1]} : vector<16x288xf32> to vector<16x16xf32>
    %c0_89 = arith.constant 0 : index
    %c192_90 = arith.constant 192 : index
    %80 = vector.load %arg7[%c0_89, %c192_90] : memref<16x256xf32, #tpu.memory_space<vmem>>, vector<16x16xf32>
    tpu.vector_store %arg7[%c0_89, %c192_90], %79 {strides = array<i32>} : memref<16x256xf32, #tpu.memory_space<vmem>>, vector<16x16xf32>,
    %81 = vector.extract_strided_slice %54 {offsets = [0, 234], sizes = [16, 16], strides = [1, 1]} : vector<16x288xf32> to vector<16x16xf32>
    %c0_91 = arith.constant 0 : index
    %c208_92 = arith.constant 208 : index
    %82 = vector.load %arg7[%c0_91, %c208_92] : memref<16x256xf32, #tpu.memory_space<vmem>>, vector<16x16xf32>
    tpu.vector_store %arg7[%c0_91, %c208_92], %81 {strides = array<i32>} : memref<16x256xf32, #tpu.memory_space<vmem>>, vector<16x16xf32>,
    %83 = vector.extract_strided_slice %54 {offsets = [0, 252], sizes = [16, 16], strides = [1, 1]} : vector<16x288xf32> to vector<16x16xf32>
    %c0_93 = arith.constant 0 : index
    %c224_94 = arith.constant 224 : index
    %84 = vector.load %arg7[%c0_93, %c224_94] : memref<16x256xf32, #tpu.memory_space<vmem>>, vector<16x16xf32>
    tpu.vector_store %arg7[%c0_93, %c224_94], %83 {strides = array<i32>} : memref<16x256xf32, #tpu.memory_space<vmem>>, vector<16x16xf32>,
    %85 = vector.extract_strided_slice %54 {offsets = [0, 270], sizes = [16, 16], strides = [1, 1]} : vector<16x288xf32> to vector<16x16xf32>
    %c0_95 = arith.constant 0 : index
    %c240_96 = arith.constant 240 : index
    %86 = vector.load %arg7[%c0_95, %c240_96] : memref<16x256xf32, #tpu.memory_space<vmem>>, vector<16x16xf32>
    tpu.vector_store %arg7[%c0_95, %c240_96], %85 {strides = array<i32>} : memref<16x256xf32, #tpu.memory_space<vmem>>, vector<16x16xf32>,
    %c0_97 = arith.constant 0 : index
    %c0_98 = arith.constant 0 : index
    %87 = vector.load %arg7[%c0_97, %c0_98] : memref<16x256xf32, #tpu.memory_space<vmem>>, vector<8x256xf32>
    %c8_99 = arith.constant 8 : index
    %c0_100 = arith.constant 0 : index
    %88 = vector.load %arg7[%c8_99, %c0_100] : memref<16x256xf32, #tpu.memory_space<vmem>>, vector<8x256xf32>
    %cst_101 = arith.constant dense<0.000000e+00> : vector<8xf32>
    %89 = vector.multi_reduction <add>, %87, %cst_101 [1] : vector<8x256xf32> to vector<8xf32>
    %90 = vector.shape_cast %89 : vector<8xf32> to vector<8x1xf32>
    %91 = arith.mulf %87, %87 : vector<8x256xf32>
    %cst_102 = arith.constant dense<0.000000e+00> : vector<8xf32>
    %92 = vector.multi_reduction <add>, %91, %cst_102 [1] : vector<8x256xf32> to vector<8xf32>
    %93 = vector.shape_cast %92 : vector<8xf32> to vector<8x1xf32>
    %cst_103 = arith.constant dense<0.000000e+00> : vector<8xf32>
    %94 = vector.multi_reduction <add>, %88, %cst_103 [1] : vector<8x256xf32> to vector<8xf32>
    %95 = vector.shape_cast %94 : vector<8xf32> to vector<8x1xf32>
    %96 = arith.mulf %88, %88 : vector<8x256xf32>
    %cst_104 = arith.constant dense<0.000000e+00> : vector<8xf32>
    %97 = vector.multi_reduction <add>, %96, %cst_104 [1] : vector<8x256xf32> to vector<8xf32>
    %98 = vector.shape_cast %97 : vector<8xf32> to vector<8x1xf32>
    %99 = arith.addf %90, %95 : vector<8x1xf32>
    %100 = arith.addf %93, %98 : vector<8x1xf32>
    %cst_105 = arith.constant 0.001953125 : f32
    %101 = vector.broadcast %cst_105 : f32 to vector<8x1xf32>
    %102 = arith.mulf %99, %101 : vector<8x1xf32>
    %cst_106 = arith.constant 0.001953125 : f32
    %103 = vector.broadcast %cst_106 : f32 to vector<8x1xf32>
    %104 = arith.mulf %100, %103 : vector<8x1xf32>
    %105 = arith.mulf %102, %102 : vector<8x1xf32>
    %106 = arith.subf %104, %105 : vector<8x1xf32>
    %cst_107 = arith.constant 9.99999974E-6 : f32
    %107 = vector.broadcast %cst_107 : f32 to vector<8x1xf32>
    %108 = arith.addf %106, %107 : vector<8x1xf32>
    %109 = math.rsqrt %108 : vector<8x1xf32>
    %c0_108 = arith.constant 0 : index
    %c0_109 = arith.constant 0 : index
    %110 = vector.load %arg2[%c0_108, %c0_109] : memref<8x1xf32, #tpu.memory_space<vmem>>, vector<8x1xf32>
    %111 = arith.mulf %109, %110 : vector<8x1xf32>
    %c0_110 = arith.constant 0 : index
    %c0_111 = arith.constant 0 : index
    %112 = vector.load %arg3[%c0_110, %c0_111] : memref<8x1xf32, #tpu.memory_space<vmem>>, vector<8x1xf32>
    %113 = arith.mulf %102, %111 : vector<8x1xf32>
    %114 = arith.subf %112, %113 : vector<8x1xf32>
    %115 = vector.broadcast %111 : vector<8x1xf32> to vector<8x256xf32>
    %116 = arith.mulf %87, %115 : vector<8x256xf32>
    %117 = vector.broadcast %114 : vector<8x1xf32> to vector<8x256xf32>
    %118 = arith.addf %116, %117 : vector<8x256xf32>
    %cst_112 = arith.constant 0.000000e+00 : f32
    %119 = vector.broadcast %cst_112 : f32 to vector<8x256xf32>
    %120 = arith.maximumf %118, %119 : vector<8x256xf32>
    %c0_113 = arith.constant 0 : index
    %c0_114 = arith.constant 0 : index
    %121 = vector.load %arg4[%c0_113, %c0_114] : memref<16x256xf32, #tpu.memory_space<vmem>>, vector<8x256xf32>
    tpu.vector_store %arg4[%c0_113, %c0_114], %120 {strides = array<i32>} : memref<16x256xf32, #tpu.memory_space<vmem>>, vector<8x256xf32>,
    %122 = vector.broadcast %111 : vector<8x1xf32> to vector<8x256xf32>
    %123 = arith.mulf %88, %122 : vector<8x256xf32>
    %124 = vector.broadcast %114 : vector<8x1xf32> to vector<8x256xf32>
    %125 = arith.addf %123, %124 : vector<8x256xf32>
    %cst_115 = arith.constant 0.000000e+00 : f32
    %126 = vector.broadcast %cst_115 : f32 to vector<8x256xf32>
    %127 = arith.maximumf %125, %126 : vector<8x256xf32>
    %c8_116 = arith.constant 8 : index
    %c0_117 = arith.constant 0 : index
    %128 = vector.load %arg4[%c8_116, %c0_117] : memref<16x256xf32, #tpu.memory_space<vmem>>, vector<8x256xf32>
    tpu.vector_store %arg4[%c8_116, %c0_117], %127 {strides = array<i32>} : memref<16x256xf32, #tpu.memory_space<vmem>>, vector<8x256xf32>,
    return
  }
}

</mosaic_0001>

<llo_original>
// kernel: tpu_custom_call.1
$region0: #{tpu_custom_call.1}
  #allocation0 [shape = 'u32[]', space=smem, size = 0x4, offset = 0x4, fixed_abs, tag = 'smem constant byte address 0x4 - core index']
  #allocation1 [shape = 'u32[144,128]{1,0:T(1,128)}', space=vmem, size = 0x12000, scoped, tag = 'internal scratch']
  #allocation2 [shape = 'f32[8,326]{1,0:T(8,128)}', space=vmem, size = 0x3000, scoped, tag = 'scratch operand']
  #allocation3 [shape = 'f32[72,288]{1,0:T(8,128)}', space=vmem, size = 0x1b000, scoped, tag = 'scratch operand']
  #allocation4 [shape = 'f32[16,256]{1,0:T(8,128)}', space=vmem, size = 0x4000, scoped, tag = 'scratch operand']
  %s0 = inlined_call_operand.vmem [shape: f32[8,256], index: 0, kind: input, shape index: {}]
  %s1 = inlined_call_operand.hbm [shape: f32[16,72], index: 1, kind: input, shape index: {}]
  %s2 = inlined_call_operand.vmem [shape: f32[8,1], index: 2, kind: input, shape index: {}]
  %s3 = inlined_call_operand.vmem [shape: f32[8,1], index: 3, kind: input, shape index: {}]
  %s4 = inlined_call_operand.hbm [shape: f32[16,256], index: 4, kind: output, shape index: {}]
  %s5 = sld [smem:[#allocation0]]
  $region30: #{tpu_custom_call.1} parent=0
    _
  %s7 = ssub.s32 1, %s5
  %s8 = scalar_select 0, %s7, %s5
  $region1: #{tpu_custom_call.1} parent=0
    #allocation5 [shape = 'u8[8192]{0}', space=vmem, size = 0x2000, scoped, tag = 'input window, operand 1, single buffered']
    #allocation6 [shape = 's32[1]{0}', space=sflag, size = 0x4, scoped, tag = 'scoped memory for tpu_custom_call.1']
    #allocation7 [shape = 's32[1]{0}', space=sflag, size = 0x4, scoped, tag = 'scoped memory for tpu_custom_call.1']
    #allocation8 [shape = 'u8[16384]{0}', space=vmem, size = 0x4000, scoped, tag = 'output window, operand 0, single buffered']
    %9 = vsyncpa [#allocation6], 0
    %10 = vsyncpa [#allocation7], 0
    // Predicated region
    $region2: #{tpu_custom_call.1} parent=1 // pred_check
      _
    $region3: #{tpu_custom_call.1} parent=1 // pred_check_branch
      %12 = sbr.rel (0) target = $region5
    $region4: #{tpu_custom_call.1} parent=1 // pred_region
      _
    $region5: #{tpu_custom_call.1} parent=1 // pred_fallthru
      _
    // Predicated region
    $region6: #{tpu_custom_call.1} parent=1 // pred_check
      _
    $region7: #{tpu_custom_call.1} parent=1 // pred_check_branch
      %14 = sbr.rel (0) target = $region9
    $region8: #{tpu_custom_call.1} parent=1 // pred_region
      %s16 = ssub.s32 256, 256
      %17 = vsyncadd [#allocation6], %s16
      %s18 = sshll.u32 [#allocation5], 4
      %s19 = int_to_ptr.vmem [resolvable:$true] %s18
      %24 = dma.hbm_to_vmem [thread:$0]  %s1, 256, %s19, [#allocation6], 128, 128, 8
    $region9: #{tpu_custom_call.1} parent=1 // pred_fallthru
      _
    // Predicated region
    $region10: #{tpu_custom_call.1} parent=1 // pred_check
      _
    $region11: #{tpu_custom_call.1} parent=1 // pred_check_branch
      %26 = sbr.rel (0) target = $region13
    $region12: #{tpu_custom_call.1} parent=1 // pred_region
      _
    $region13: #{tpu_custom_call.1} parent=1 // pred_fallthru
      _
    // Predicated region
    $region14: #{tpu_custom_call.1} parent=1 // pred_check
      _
    $region15: #{tpu_custom_call.1} parent=1 // pred_check_branch
      %28 = sbr.rel (0) target = $region17
    $region16: #{tpu_custom_call.1} parent=1 // pred_region
      _
    $region17: #{tpu_custom_call.1} parent=1 // pred_fallthru
      _
    // Predicated region
    $region18: #{tpu_custom_call.1} parent=1 // pred_check
      _
    $region19: #{tpu_custom_call.1} parent=1 // pred_check_branch
      %30 = sbr.rel (0) target = $region21
    $region20: #{tpu_custom_call.1} parent=1 // pred_region
      %31 = dma.done [#allocation6], 256
    $region21: #{tpu_custom_call.1} parent=1 // pred_fallthru
      _
    %32 = vst [vmem:[#allocation2] sm:$0xff] 0.0
    %33 = vst [vmem:[#allocation2 + $0x8] sm:$0xff] 0.0
    %vm34 = vcmask 572416
    %35 = vst.msk [vmem:[#allocation2 + $0x10] sm:$0xff] %vm34, 0.0
    %v36 = vld [vmem:[%s0] sm:$0xff]
    %38 = vrot.lane.b32.xlu0 %v36, 19
    %v39 = vpop.permute.xlu0 %38
    %vm41 = vcmask 285848
    %42 = vst.msk [vmem:[#allocation2] sm:$0xff] %vm41, %v39
    %v43 = vld [vmem:[%s0] sm:$0xff]
    %45 = vrot.lane.b32.xlu0 %v43, 21
    %v46 = vpop.permute.xlu0 %45
    %vm48 = vcmask 433448
    %49 = vst.msk [vmem:[#allocation2] sm:$0xff] %vm48, %v46
    %v50 = vld [vmem:[%s0] sm:$0xff]
    %52 = vrot.lane.b32.xlu0 %v50, 23
    %v53 = vpop.permute.xlu0 %52
    %vm55 = vcmask 581048
    %56 = vst.msk [vmem:[#allocation2] sm:$0xff] %vm55, %v53
    %v57 = vld [vmem:[%s0] sm:$0xff]
    %59 = vrot.lane.b32.xlu0 %v57, 25
    %v60 = vpop.permute.xlu0 %59
    %vm62 = vcmask 728648
    %63 = vst.msk [vmem:[#allocation2] sm:$0xff] %vm62, %v60
    %v64 = vld [vmem:[%s0] sm:$0xff]
    %66 = vrot.lane.b32.xlu0 %v64, 27
    %v67 = vpop.permute.xlu0 %66
    %vm69 = vcmask 876248
    %70 = vst.msk [vmem:[#allocation2] sm:$0xff] %vm69, %v67
    %v71 = vld [vmem:[%s0] sm:$0xff]
    %73 = vrot.lane.b32.xlu0 %v71, 29
    %v74 = vpop.permute.xlu0 %73
    %vm76 = vcmask 1023848
    %77 = vst.msk [vmem:[#allocation2] sm:$0xff] %vm76, %v74
    %v78 = vld [vmem:[%s0] sm:$0xff]
    %80 = vrot.lane.b32.xlu0 %v78, 31
    %v81 = vpop.permute.xlu0 %80
    %vm83 = vcmask 1048568
    %84 = vst.msk [vmem:[#allocation2] sm:$0xff] %vm83, %v81
    %vm85 = vcmask 121856
    %86 = vst.msk [vmem:[#allocation2 + $0x8] sm:$0xff] %vm85, %v81
    %v87 = vld [vmem:[%s0] sm:$0xff]
    %89 = vrot.lane.b32.xlu0 %v87, 33
    %v90 = vpop.permute.xlu0 %89
    %vm92 = vcmask 269448
    %93 = vst.msk [vmem:[#allocation2 + $0x8] sm:$0xff] %vm92, %v90
    %v94 = vld [vmem:[%s0 + $0x8] sm:$0xff]
    %96 = vrot.lane.b32.xlu0 %v94, 35
    %v97 = vpop.permute.xlu0 %96
    %vm99 = vcmask 417048
    %100 = vst.msk [vmem:[#allocation2 + $0x8] sm:$0xff] %vm99, %v97
    %v101 = vld [vmem:[%s0 + $0x8] sm:$0xff]
    %103 = vrot.lane.b32.xlu0 %v101, 37
    %v104 = vpop.permute.xlu0 %103
    %vm106 = vcmask 564648
    %107 = vst.msk [vmem:[#allocation2 + $0x8] sm:$0xff] %vm106, %v104
    %v108 = vld [vmem:[%s0 + $0x8] sm:$0xff]
    %110 = vrot.lane.b32.xlu0 %v108, 39
    %v111 = vpop.permute.xlu0 %110
    %vm113 = vcmask 712248
    %114 = vst.msk [vmem:[#allocation2 + $0x8] sm:$0xff] %vm113, %v111
    %v115 = vld [vmem:[%s0 + $0x8] sm:$0xff]
    %117 = vrot.lane.b32.xlu0 %v115, 41
    %v118 = vpop.permute.xlu0 %117
    %vm120 = vcmask 859848
    %121 = vst.msk [vmem:[#allocation2 + $0x8] sm:$0xff] %vm120, %v118
    %v122 = vld [vmem:[%s0 + $0x8] sm:$0xff]
    %124 = vrot.lane.b32.xlu0 %v122, 43
    %v125 = vpop.permute.xlu0 %124
    %vm127 = vcmask 1007448
    %128 = vst.msk [vmem:[#allocation2 + $0x8] sm:$0xff] %vm127, %v125
    %v129 = vld [vmem:[%s0 + $0x8] sm:$0xff]
    %131 = vrot.lane.b32.xlu0 %v129, 45
    %v132 = vpop.permute.xlu0 %131
    %vm134 = vcmask 1048552
    %135 = vst.msk [vmem:[#allocation2 + $0x8] sm:$0xff] %vm134, %v132
    %vm136 = vcmask 105472
    %137 = vst.msk [vmem:[#allocation2 + $0x10] sm:$0xff] %vm136, %v132
    %v138 = vld [vmem:[%s0 + $0x8] sm:$0xff]
    %140 = vrot.lane.b32.xlu0 %v138, 47
    %v141 = vpop.permute.xlu0 %140
    %vm143 = vcmask 253048
    %144 = vst.msk [vmem:[#allocation2 + $0x10] sm:$0xff] %vm143, %v141
    %v145 = vld [vmem:[%s0 + $0x8] sm:$0xff]
    %147 = vrot.lane.b32.xlu0 %v145, 49
    %v148 = vpop.permute.xlu0 %147
    %vm150 = vcmask 400648
    %151 = vst.msk [vmem:[#allocation2 + $0x10] sm:$0xff] %vm150, %v148
    %v152 = vld [vmem:[#allocation2] sm:$0xff]
    %v153 = vld [vmem:[#allocation2 + $0x8] sm:$0xff]
    %v154 = vld [vmem:[#allocation2 + $0x10] sm:$0xff]
    %155 = vst [vmem:[#allocation3] sm:$0xff] %v152
    %156 = vst [vmem:[#allocation3 + $0x8] sm:$0xff] %v153
    %vm157 = vcmask 261120
    %158 = vst.msk [vmem:[#allocation3 + $0x10] sm:$0xff] %vm157, %v154
    %v159 = vld [vmem:[#allocation2] sm:$0xff]
    %v160 = vld [vmem:[#allocation2 + $0x8] sm:$0xff]
    %v161 = vld [vmem:[#allocation2 + $0x10] sm:$0xff]
    %165 = vrot.lane.b32.xlu0 %v159, 127
    %v166 = vpop.permute.xlu0 %165
    %167 = vrot.lane.b32.xlu0 %v160, 127
    %v168 = vpop.permute.xlu0 %167
    %169 = vrot.lane.b32.xlu0 %v161, 127
    %v170 = vpop.permute.xlu0 %169
    %vm171 = vcmask 1039360
    %v172 = vsel %vm171, %v166, %v168
    %v173 = vsel %vm171, %v168, %v170
    %177 = vst [vmem:[#allocation3 + $0x18] sm:$0xff] %v172
    %178 = vst [vmem:[#allocation3 + $0x20] sm:$0xff] %v173
    %179 = vst.msk [vmem:[#allocation3 + $0x28] sm:$0xff] %vm157, %v170
    %v180 = vld [vmem:[#allocation2] sm:$0xff]
    %v181 = vld [vmem:[#allocation2 + $0x8] sm:$0xff]
    %v182 = vld [vmem:[#allocation2 + $0x10] sm:$0xff]
    %186 = vrot.lane.b32.xlu0 %v180, 126
    %v187 = vpop.permute.xlu0 %186
    %188 = vrot.lane.b32.xlu0 %v181, 126
    %v189 = vpop.permute.xlu0 %188
    %190 = vrot.lane.b32.xlu0 %v182, 126
    %v191 = vpop.permute.xlu0 %190
    %vm192 = vcmask 1031168
    %v193 = vsel %vm192, %v187, %v189
    %v194 = vsel %vm192, %v189, %v191
    %198 = vst [vmem:[#allocation3 + $0x30] sm:$0xff] %v193
    %199 = vst [vmem:[#allocation3 + $0x38] sm:$0xff] %v194
    %200 = vst.msk [vmem:[#allocation3 + $0x40] sm:$0xff] %vm157, %v191
    %v201 = vld [vmem:[#allocation2] sm:$0xff]
    %v202 = vld [vmem:[#allocation2 + $0x8] sm:$0xff]
    %v203 = vld [vmem:[#allocation2 + $0x10] sm:$0xff]
    %207 = vrot.lane.b32.xlu0 %v201, 110
    %v208 = vpop.permute.xlu0 %207
    %209 = vrot.lane.b32.xlu0 %v202, 110
    %v210 = vpop.permute.xlu0 %209
    %211 = vrot.lane.b32.xlu0 %v203, 110
    %v212 = vpop.permute.xlu0 %211
    %vm213 = vcmask 900096
    %v214 = vsel %vm213, %v208, %v210
    %v215 = vsel %vm213, %v210, %v212
    %219 = vst [vmem:[#allocation3 + $0x48] sm:$0xff] %v214
    %220 = vst [vmem:[#allocation3 + $0x50] sm:$0xff] %v215
    %221 = vst.msk [vmem:[#allocation3 + $0x58] sm:$0xff] %vm157, %v212
    %v222 = vld [vmem:[#allocation2] sm:$0xff]
    %v223 = vld [vmem:[#allocation2 + $0x8] sm:$0xff]
    %v224 = vld [vmem:[#allocation2 + $0x10] sm:$0xff]
    %228 = vrot.lane.b32.xlu0 %v222, 109
    %v229 = vpop.permute.xlu0 %228
    %230 = vrot.lane.b32.xlu0 %v223, 109
    %v231 = vpop.permute.xlu0 %230
    %232 = vrot.lane.b32.xlu0 %v224, 109
    %v233 = vpop.permute.xlu0 %232
    %vm234 = vcmask 891904
    %v235 = vsel %vm234, %v229, %v231
    %v236 = vsel %vm234, %v231, %v233
    %240 = vst [vmem:[#allocation3 + $0x60] sm:$0xff] %v235
    %241 = vst [vmem:[#allocation3 + $0x68] sm:$0xff] %v236
    %242 = vst.msk [vmem:[#allocation3 + $0x70] sm:$0xff] %vm157, %v233
    %v243 = vld [vmem:[#allocation2] sm:$0xff]
    %v244 = vld [vmem:[#allocation2 + $0x8] sm:$0xff]
    %v245 = vld [vmem:[#allocation2 + $0x10] sm:$0xff]
    %249 = vrot.lane.b32.xlu0 %v243, 108
    %v250 = vpop.permute.xlu0 %249
    %251 = vrot.lane.b32.xlu0 %v244, 108
    %v252 = vpop.permute.xlu0 %251
    %253 = vrot.lane.b32.xlu0 %v245, 108
    %v254 = vpop.permute.xlu0 %253
    %vm255 = vcmask 883712
    %v256 = vsel %vm255, %v250, %v252
    %v257 = vsel %vm255, %v252, %v254
    %261 = vst [vmem:[#allocation3 + $0x78] sm:$0xff] %v256
    %262 = vst [vmem:[#allocation3 + $0x80] sm:$0xff] %v257
    %263 = vst.msk [vmem:[#allocation3 + $0x88] sm:$0xff] %vm157, %v254
    %v264 = vld [vmem:[#allocation2] sm:$0xff]
    %v265 = vld [vmem:[#allocation2 + $0x8] sm:$0xff]
    %v266 = vld [vmem:[#allocation2 + $0x10] sm:$0xff]
    %270 = vrot.lane.b32.xlu0 %v264, 92
    %v271 = vpop.permute.xlu0 %270
    %272 = vrot.lane.b32.xlu0 %v265, 92
    %v273 = vpop.permute.xlu0 %272
    %274 = vrot.lane.b32.xlu0 %v266, 92
    %v275 = vpop.permute.xlu0 %274
    %vm276 = vcmask 752640
    %v277 = vsel %vm276, %v271, %v273
    %v278 = vsel %vm276, %v273, %v275
    %282 = vst [vmem:[#allocation3 + $0x90] sm:$0xff] %v277
    %283 = vst [vmem:[#allocation3 + $0x98] sm:$0xff] %v278
    %284 = vst.msk [vmem:[#allocation3 + $0xa0] sm:$0xff] %vm157, %v275
    %v285 = vld [vmem:[#allocation2] sm:$0xff]
    %v286 = vld [vmem:[#allocation2 + $0x8] sm:$0xff]
    %v287 = vld [vmem:[#allocation2 + $0x10] sm:$0xff]
    %291 = vrot.lane.b32.xlu0 %v285, 91
    %v292 = vpop.permute.xlu0 %291
    %293 = vrot.lane.b32.xlu0 %v286, 91
    %v294 = vpop.permute.xlu0 %293
    %295 = vrot.lane.b32.xlu0 %v287, 91
    %v296 = vpop.permute.xlu0 %295
    %vm297 = vcmask 744448
    %v298 = vsel %vm297, %v292, %v294
    %v299 = vsel %vm297, %v294, %v296
    %303 = vst [vmem:[#allocation3 + $0xa8] sm:$0xff] %v298
    %304 = vst [vmem:[#allocation3 + $0xb0] sm:$0xff] %v299
    %305 = vst.msk [vmem:[#allocation3 + $0xb8] sm:$0xff] %vm157, %v296
    %v306 = vld [vmem:[#allocation2] sm:$0xff]
    %v307 = vld [vmem:[#allocation2 + $0x8] sm:$0xff]
    %v308 = vld [vmem:[#allocation2 + $0x10] sm:$0xff]
    %312 = vrot.lane.b32.xlu0 %v306, 90
    %v313 = vpop.permute.xlu0 %312
    %314 = vrot.lane.b32.xlu0 %v307, 90
    %v315 = vpop.permute.xlu0 %314
    %316 = vrot.lane.b32.xlu0 %v308, 90
    %v317 = vpop.permute.xlu0 %316
    %vm318 = vcmask 736256
    %v319 = vsel %vm318, %v313, %v315
    %v320 = vsel %vm318, %v315, %v317
    %324 = vst [vmem:[#allocation3 + $0xc0] sm:$0xff] %v319
    %325 = vst [vmem:[#allocation3 + $0xc8] sm:$0xff] %v320
    %326 = vst.msk [vmem:[#allocation3 + $0xd0] sm:$0xff] %vm157, %v317
    %v327 = vld [vmem:[#allocation5] sm:$0xff]
    %v328 = vld [vmem:[#allocation5 + $0x8] sm:$0xff]
    %v329 = vld [vmem:[#allocation3] sm:$0xff]
    %v330 = vld [vmem:[#allocation3 + $0x8] sm:$0xff]
    %v331 = vld [vmem:[#allocation3 + $0x10] sm:$0xff]
    %v332 = vld [vmem:[#allocation3 + $0x18] sm:$0xff]
    %v333 = vld [vmem:[#allocation3 + $0x20] sm:$0xff]
    %v334 = vld [vmem:[#allocation3 + $0x28] sm:$0xff]
    %v335 = vld [vmem:[#allocation3 + $0x30] sm:$0xff]
    %v336 = vld [vmem:[#allocation3 + $0x38] sm:$0xff]
    %v337 = vld [vmem:[#allocation3 + $0x40] sm:$0xff]
    %v338 = vld [vmem:[#allocation3 + $0x48] sm:$0xff]
    %v339 = vld [vmem:[#allocation3 + $0x50] sm:$0xff]
    %v340 = vld [vmem:[#allocation3 + $0x58] sm:$0xff]
    %v341 = vld [vmem:[#allocation3 + $0x60] sm:$0xff]
    %v342 = vld [vmem:[#allocation3 + $0x68] sm:$0xff]
    %v343 = vld [vmem:[#allocation3 + $0x70] sm:$0xff]
    %v344 = vld [vmem:[#allocation3 + $0x78] sm:$0xff]
    %v345 = vld [vmem:[#allocation3 + $0x80] sm:$0xff]
    %v346 = vld [vmem:[#allocation3 + $0x88] sm:$0xff]
    %v347 = vld [vmem:[#allocation3 + $0x90] sm:$0xff]
    %v348 = vld [vmem:[#allocation3 + $0x98] sm:$0xff]
    %v349 = vld [vmem:[#allocation3 + $0xa0] sm:$0xff]
    %v350 = vld [vmem:[#allocation3 + $0xa8] sm:$0xff]
    %v351 = vld [vmem:[#allocation3 + $0xb0] sm:$0xff]
    %v352 = vld [vmem:[#allocation3 + $0xb8] sm:$0xff]
    %v353 = vld [vmem:[#allocation3 + $0xc0] sm:$0xff]
    %v354 = vld [vmem:[#allocation3 + $0xc8] sm:$0xff]
    %v355 = vld [vmem:[#allocation3 + $0xd0] sm:$0xff]
    %vm356 = vcmask 588800
    %v358 = vsel %vm356, %v327, 0
    %v361 = vsel %vm356, %v328, 0
    %363 = vmatprep.subr.mxu0 0.0
    %364 = vmatpush1.msra.mxu0 0.0
    %365 = vmatprep.subr.mxu0 0.0
    %366 = vmatpush1.msra.mxu0 0.0
    %367 = vmatprep.subr.mxu0 0.0
    %368 = vmatpush1.msra.mxu0 0.0
    %369 = vmatprep.subr.mxu0 0.0
    %370 = vmatpush1.msra.mxu0 0.0
    %371 = vmatprep.subr.mxu0 0.0
    %372 = vmatpush1.msra.mxu0 0.0
    %373 = vmatprep.subr.mxu0 0.0
    %374 = vmatpush1.msra.mxu0 0.0
    %375 = vmatprep.subr.mxu0 0.0
    %376 = vmatpush1.msra.mxu0 0.0
    %377 = vmatprep.subr.mxu0 %v354
    %378 = vmatpush1.msra.mxu0 %v353
    %379 = vmatprep.subr.mxu0 %v351
    %380 = vmatpush1.msra.mxu0 %v350
    %381 = vmatprep.subr.mxu0 %v348
    %382 = vmatpush1.msra.mxu0 %v347
    %383 = vmatprep.subr.mxu0 %v345
    %384 = vmatpush1.msra.mxu0 %v344
    %385 = vmatprep.subr.mxu0 %v342
    %386 = vmatpush1.msra.mxu0 %v341
    %387 = vmatprep.subr.mxu0 %v339
    %388 = vmatpush1.msra.mxu0 %v338
    %389 = vmatprep.subr.mxu0 %v336
    %390 = vmatpush1.msra.mxu0 %v335
    %391 = vmatprep.subr.mxu0 %v333
    %392 = vmatpush1.msra.mxu0 %v332
    %393 = vmatprep.subr.mxu0 %v330
    %394 = vmatpush1.msra.mxu0 %v329
    %395 = vmatprep.subr.mxu0 0.0
    %396 = vmatpush2.msra.mxu0 0.0
    %397 = vmatprep.subr.mxu0 0.0
    %398 = vmatpush2.msra.mxu0 0.0
    %399 = vmatprep.subr.mxu0 0.0
    %400 = vmatpush2.msra.mxu0 0.0
    %401 = vmatprep.subr.mxu0 0.0
    %402 = vmatpush2.msra.mxu0 0.0
    %403 = vmatprep.subr.mxu0 0.0
    %404 = vmatpush2.msra.mxu0 0.0
    %405 = vmatprep.subr.mxu0 0.0
    %406 = vmatpush2.msra.mxu0 0.0
    %407 = vmatprep.subr.mxu0 0.0
    %408 = vmatpush2.msra.mxu0 0.0
    %409 = vmatprep.subr.mxu0 0.0
    %410 = vmatpush2.msra.mxu0 0.0
    %411 = vmatprep.subr.mxu0 0.0
    %412 = vmatpush2.msra.mxu0 0.0
    %413 = vmatprep.subr.mxu0 0.0
    %414 = vmatpush2.msra.mxu0 0.0
    %415 = vmatprep.subr.mxu0 0.0
    %416 = vmatpush2.msra.mxu0 0.0
    %417 = vmatprep.subr.mxu0 0.0
    %418 = vmatpush2.msra.mxu0 0.0
    %419 = vmatprep.subr.mxu0 0.0
    %420 = vmatpush2.msra.mxu0 0.0
    %421 = vmatprep.subr.mxu0 0.0
    %422 = vmatpush2.msra.mxu0 0.0
    %423 = vmatprep.subr.mxu0 0.0
    %424 = vmatpush2.msra.mxu0 0.0
    %425 = vmatprep.subr.mxu0 0.0
    %426 = vmatpush2.msra.mxu0 0.0
    %427 = vmatprep.mubr.f32.mxu0 0.0
    %428 = vmatmul.mubr.f32.gmra.mxu0 %v358
    %v429 = vpop.f32.mrf.mxu0
    %v430 = vadd.f32 0.0, %v429
    %v431 = vpop.f32.mrf.mxu0
    %v432 = vadd.f32 0.0, %v431
    %433 = vmatprep.mubr.f32.mxu0 0.0
    %434 = vmatmul.mubr.f32.gmra.mxu0 %v361
    %v435 = vpop.f32.mrf.mxu0
    %v436 = vadd.f32 0.0, %v435
    %v437 = vpop.f32.mrf.mxu0
    %v438 = vadd.f32 0.0, %v437
    %439 = vdwg.mxu0
    %440 = vmatprep.subr.mxu0 0.0
    %441 = vmatpush1.msra.mxu0 0.0
    %442 = vmatprep.subr.mxu0 0.0
    %443 = vmatpush1.msra.mxu0 0.0
    %444 = vmatprep.subr.mxu0 0.0
    %445 = vmatpush1.msra.mxu0 0.0
    %446 = vmatprep.subr.mxu0 0.0
    %447 = vmatpush1.msra.mxu0 0.0
    %448 = vmatprep.subr.mxu0 0.0
    %449 = vmatpush1.msra.mxu0 0.0
    %450 = vmatprep.subr.mxu0 0.0
    %451 = vmatpush1.msra.mxu0 0.0
    %452 = vmatprep.subr.mxu0 0.0
    %453 = vmatpush1.msra.mxu0 0.0
    %454 = vmatprep.subr.mxu0 0.0
    %455 = vmatpush1.msra.mxu0 %v355
    %456 = vmatprep.subr.mxu0 0.0
    %457 = vmatpush1.msra.mxu0 %v352
    %458 = vmatprep.subr.mxu0 0.0
    %459 = vmatpush1.msra.mxu0 %v349
    %460 = vmatprep.subr.mxu0 0.0
    %461 = vmatpush1.msra.mxu0 %v346
    %462 = vmatprep.subr.mxu0 0.0
    %463 = vmatpush1.msra.mxu0 %v343
    %464 = vmatprep.subr.mxu0 0.0
    %465 = vmatpush1.msra.mxu0 %v340
    %466 = vmatprep.subr.mxu0 0.0
    %467 = vmatpush1.msra.mxu0 %v337
    %468 = vmatprep.subr.mxu0 0.0
    %469 = vmatpush1.msra.mxu0 %v334
    %470 = vmatprep.subr.mxu0 0.0
    %471 = vmatpush1.msra.mxu0 %v331
    %472 = vmatprep.subr.mxu0 0.0
    %473 = vmatpush2.msra.mxu0 0.0
    %474 = vmatprep.subr.mxu0 0.0
    %475 = vmatpush2.msra.mxu0 0.0
    %476 = vmatprep.subr.mxu0 0.0
    %477 = vmatpush2.msra.mxu0 0.0
    %478 = vmatprep.subr.mxu0 0.0
    %479 = vmatpush2.msra.mxu0 0.0
    %480 = vmatprep.subr.mxu0 0.0
    %481 = vmatpush2.msra.mxu0 0.0
    %482 = vmatprep.subr.mxu0 0.0
    %483 = vmatpush2.msra.mxu0 0.0
    %484 = vmatprep.subr.mxu0 0.0
    %485 = vmatpush2.msra.mxu0 0.0
    %486 = vmatprep.subr.mxu0 0.0
    %487 = vmatpush2.msra.mxu0 0.0
    %488 = vmatprep.subr.mxu0 0.0
    %489 = vmatpush2.msra.mxu0 0.0
    %490 = vmatprep.subr.mxu0 0.0
    %491 = vmatpush2.msra.mxu0 0.0
    %492 = vmatprep.subr.mxu0 0.0
    %493 = vmatpush2.msra.mxu0 0.0
    %494 = vmatprep.subr.mxu0 0.0
    %495 = vmatpush2.msra.mxu0 0.0
    %496 = vmatprep.subr.mxu0 0.0
    %497 = vmatpush2.msra.mxu0 0.0
    %498 = vmatprep.subr.mxu0 0.0
    %499 = vmatpush2.msra.mxu0 0.0
    %500 = vmatprep.subr.mxu0 0.0
    %501 = vmatpush2.msra.mxu0 0.0
    %502 = vmatprep.subr.mxu0 0.0
    %503 = vmatpush2.msra.mxu0 0.0
    %504 = vmatprep.mubr.f32.mxu0 0.0
    %505 = vmatmul.mubr.f32.gmra.mxu0 %v358
    %v506 = vpop.f32.mrf.mxu0
    %v507 = vadd.f32 0.0, %v506
    %v508 = vpop.f32.mrf.mxu0
    %509 = vmatprep.mubr.f32.mxu0 0.0
    %510 = vmatmul.mubr.f32.gmra.mxu0 %v361
    %v511 = vpop.f32.mrf.mxu0
    %v512 = vadd.f32 0.0, %v511
    %v513 = vpop.f32.mrf.mxu0
    %514 = vdwg.mxu0
    %vm515 = vcmask 130048
    %516 = vst.msk [vmem:[#allocation4] sm:$0xff] %vm515, %v430
    %517 = vst.msk [vmem:[#allocation4 + $0x10] sm:$0xff] %vm515, %v436
    %520 = vrot.lane.b32.xlu0 %v430, 126
    %v521 = vpop.permute.xlu0 %520
    %522 = vrot.lane.b32.xlu0 %v436, 126
    %v523 = vpop.permute.xlu0 %522
    %vm526 = vcmask 261248
    %527 = vst.msk [vmem:[#allocation4] sm:$0xff] %vm526, %v521
    %528 = vst.msk [vmem:[#allocation4 + $0x10] sm:$0xff] %vm526, %v523
    %529 = vrot.lane.b32.xlu0 %v430, 124
    %v530 = vpop.permute.xlu0 %529
    %531 = vrot.lane.b32.xlu0 %v436, 124
    %v532 = vpop.permute.xlu0 %531
    %vm535 = vcmask 392448
    %536 = vst.msk [vmem:[#allocation4] sm:$0xff] %vm535, %v530
    %537 = vst.msk [vmem:[#allocation4 + $0x10] sm:$0xff] %vm535, %v532
    %538 = vrot.lane.b32.xlu0 %v430, 122
    %v539 = vpop.permute.xlu0 %538
    %540 = vrot.lane.b32.xlu0 %v436, 122
    %v541 = vpop.permute.xlu0 %540
    %vm544 = vcmask 523648
    %545 = vst.msk [vmem:[#allocation4] sm:$0xff] %vm544, %v539
    %546 = vst.msk [vmem:[#allocation4 + $0x10] sm:$0xff] %vm544, %v541
    %547 = vrot.lane.b32.xlu0 %v430, 120
    %v548 = vpop.permute.xlu0 %547
    %549 = vrot.lane.b32.xlu0 %v436, 120
    %v550 = vpop.permute.xlu0 %549
    %vm553 = vcmask 654848
    %554 = vst.msk [vmem:[#allocation4] sm:$0xff] %vm553, %v548
    %555 = vst.msk [vmem:[#allocation4 + $0x10] sm:$0xff] %vm553, %v550
    %556 = vrot.lane.b32.xlu0 %v430, 118
    %v557 = vpop.permute.xlu0 %556
    %558 = vrot.lane.b32.xlu0 %v436, 118
    %v559 = vpop.permute.xlu0 %558
    %vm562 = vcmask 786048
    %563 = vst.msk [vmem:[#allocation4] sm:$0xff] %vm562, %v557
    %564 = vst.msk [vmem:[#allocation4 + $0x10] sm:$0xff] %vm562, %v559
    %565 = vrot.lane.b32.xlu0 %v430, 116
    %v566 = vpop.permute.xlu0 %565
    %567 = vrot.lane.b32.xlu0 %v436, 116
    %v568 = vpop.permute.xlu0 %567
    %vm571 = vcmask 917248
    %572 = vst.msk [vmem:[#allocation4] sm:$0xff] %vm571, %v566
    %573 = vst.msk [vmem:[#allocation4 + $0x10] sm:$0xff] %vm571, %v568
    %576 = vrot.lane.b32.xlu0 %v430, 114
    %v577 = vpop.permute.xlu0 %576
    %578 = vrot.lane.b32.xlu0 %v432, 114
    %v579 = vpop.permute.xlu0 %578
    %580 = vrot.lane.b32.xlu0 %v436, 114
    %v581 = vpop.permute.xlu0 %580
    %582 = vrot.lane.b32.xlu0 %v438, 114
    %v583 = vpop.permute.xlu0 %582
    %vm584 = vcmask 932864
    %v585 = vsel %vm584, %v577, %v579
    %v586 = vsel %vm584, %v581, %v583
    %vm589 = vcmask 1048448
    %590 = vst.msk [vmem:[#allocation4] sm:$0xff] %vm589, %v585
    %591 = vst.msk [vmem:[#allocation4 + $0x10] sm:$0xff] %vm589, %v586
    %592 = vrot.lane.b32.xlu0 %v432, 112
    %v593 = vpop.permute.xlu0 %592
    %594 = vrot.lane.b32.xlu0 %v438, 112
    %v595 = vpop.permute.xlu0 %594
    %598 = vst.msk [vmem:[#allocation4 + $0x8] sm:$0xff] %vm515, %v593
    %599 = vst.msk [vmem:[#allocation4 + $0x18] sm:$0xff] %vm515, %v595
    %600 = vrot.lane.b32.xlu0 %v432, 110
    %v601 = vpop.permute.xlu0 %600
    %602 = vrot.lane.b32.xlu0 %v438, 110
    %v603 = vpop.permute.xlu0 %602
    %606 = vst.msk [vmem:[#allocation4 + $0x8] sm:$0xff] %vm526, %v601
    %607 = vst.msk [vmem:[#allocation4 + $0x18] sm:$0xff] %vm526, %v603
    %608 = vrot.lane.b32.xlu0 %v432, 108
    %v609 = vpop.permute.xlu0 %608
    %610 = vrot.lane.b32.xlu0 %v438, 108
    %v611 = vpop.permute.xlu0 %610
    %614 = vst.msk [vmem:[#allocation4 + $0x8] sm:$0xff] %vm535, %v609
    %615 = vst.msk [vmem:[#allocation4 + $0x18] sm:$0xff] %vm535, %v611
    %616 = vrot.lane.b32.xlu0 %v432, 106
    %v617 = vpop.permute.xlu0 %616
    %618 = vrot.lane.b32.xlu0 %v438, 106
    %v619 = vpop.permute.xlu0 %618
    %622 = vst.msk [vmem:[#allocation4 + $0x8] sm:$0xff] %vm544, %v617
    %623 = vst.msk [vmem:[#allocation4 + $0x18] sm:$0xff] %vm544, %v619
    %624 = vrot.lane.b32.xlu0 %v432, 104
    %v625 = vpop.permute.xlu0 %624
    %626 = vrot.lane.b32.xlu0 %v438, 104
    %v627 = vpop.permute.xlu0 %626
    %630 = vst.msk [vmem:[#allocation4 + $0x8] sm:$0xff] %vm553, %v625
    %631 = vst.msk [vmem:[#allocation4 + $0x18] sm:$0xff] %vm553, %v627
    %632 = vrot.lane.b32.xlu0 %v432, 102
    %v633 = vpop.permute.xlu0 %632
    %634 = vrot.lane.b32.xlu0 %v438, 102
    %v635 = vpop.permute.xlu0 %634
    %638 = vst.msk [vmem:[#allocation4 + $0x8] sm:$0xff] %vm562, %v633
    %639 = vst.msk [vmem:[#allocation4 + $0x18] sm:$0xff] %vm562, %v635
    %642 = vrot.lane.b32.xlu0 %v432, 100
    %v643 = vpop.permute.xlu0 %642
    %644 = vrot.lane.b32.xlu0 %v507, 100
    %v645 = vpop.permute.xlu0 %644
    %646 = vrot.lane.b32.xlu0 %v438, 100
    %v647 = vpop.permute.xlu0 %646
    %648 = vrot.lane.b32.xlu0 %v512, 100
    %v649 = vpop.permute.xlu0 %648
    %vm650 = vcmask 818176
    %v651 = vsel %vm650, %v643, %v645
    %v652 = vsel %vm650, %v647, %v649
    %655 = vst.msk [vmem:[#allocation4 + $0x8] sm:$0xff] %vm571, %v651
    %656 = vst.msk [vmem:[#allocation4 + $0x18] sm:$0xff] %vm571, %v652
    %657 = vrot.lane.b32.xlu0 %v507, 98
    %v658 = vpop.permute.xlu0 %657
    %659 = vrot.lane.b32.xlu0 %v512, 98
    %v660 = vpop.permute.xlu0 %659
    %663 = vst.msk [vmem:[#allocation4 + $0x8] sm:$0xff] %vm589, %v658
    %664 = vst.msk [vmem:[#allocation4 + $0x18] sm:$0xff] %vm589, %v660
    %v665 = vld [vmem:[#allocation4] sm:$0xff]
    %v666 = vld [vmem:[#allocation4 + $0x8] sm:$0xff]
    %v667 = vld [vmem:[#allocation4 + $0x10] sm:$0xff]
    %v668 = vld [vmem:[#allocation4 + $0x18] sm:$0xff]
    %v669 = vadd.f32 %v665, %v666
    %670 = vadd.xlane.f32.xlu0 %v669
    %v671 = vpop.xlane.xlu0 %670
    %v672 = vmul.f32 %v665, %v665
    %v673 = vmul.f32 %v666, %v666
    %v674 = vadd.f32 %v672, %v673
    %675 = vadd.xlane.f32.xlu0 %v674
    %v676 = vpop.xlane.xlu0 %675
    %v677 = vadd.f32 %v667, %v668
    %678 = vadd.xlane.f32.xlu0 %v677
    %v679 = vpop.xlane.xlu0 %678
    %v680 = vmul.f32 %v667, %v667
    %v681 = vmul.f32 %v668, %v668
    %v682 = vadd.f32 %v680, %v681
    %683 = vadd.xlane.f32.xlu0 %v682
    %v684 = vpop.xlane.xlu0 %683
    %v685 = vadd.f32 %v671, %v679
    %v686 = vadd.f32 %v676, %v684
    %v687 = vmul.f32 %v685, 0.001953125
    %v688 = vmul.f32 %v686, 0.001953125
    %v689 = vmul.f32 %v687, %v687
    %v690 = vsub.f32 %v688, %v689
    %v691 = vadd.f32 %v690, 1e-05
    %v692 = vrsqrt.pop %v691
    %v693 = vld [vmem:[%s2] sm:$0xff]
    %v694 = vmul.f32 %v692, %v693
    %v695 = vld [vmem:[%s3] sm:$0xff]
    %v696 = vmul.f32 %v687, %v694
    %v697 = vsub.f32 %v695, %v696
    %699 = vset.pattern.permute.xlu0 0
    %700 = vperm.xlu0 %699, %v694
    %v701 = vpop.permute.xlu0 %700
    %v703 = vmul.f32 %v665, %v701
    %v704 = vmul.f32 %v666, %v701
    %706 = vset.pattern.permute.xlu0 0
    %707 = vperm.xlu0 %706, %v697
    %v708 = vpop.permute.xlu0 %707
    %v710 = vadd.f32 %v703, %v708
    %v711 = vadd.f32 %v704, %v708
    %v712 = vmax.f32 %v710, 0.0
    %v713 = vmax.f32 %v711, 0.0
    %714 = vst [vmem:[#allocation8] sm:$0xff] %v712
    %715 = vst [vmem:[#allocation8 + $0x8] sm:$0xff] %v713
    %v716 = vmul.f32 %v667, %v701
    %v717 = vmul.f32 %v668, %v701
    %v718 = vadd.f32 %v716, %v708
    %v719 = vadd.f32 %v717, %v708
    %v720 = vmax.f32 %v718, 0.0
    %v721 = vmax.f32 %v719, 0.0
    %722 = vst [vmem:[#allocation8 + $0x10] sm:$0xff] %v720
    %723 = vst [vmem:[#allocation8 + $0x18] sm:$0xff] %v721
    // Predicated region
    $region22: #{tpu_custom_call.1} parent=1 // pred_check
      _
    $region23: #{tpu_custom_call.1} parent=1 // pred_check_branch
      %725 = sbr.rel (0) target = $region25
    $region24: #{tpu_custom_call.1} parent=1 // pred_region
      %s727 = ssub.s32 512, 512
      %728 = vsyncadd [#allocation7], %s727
      %s729 = sshll.u32 [#allocation8], 4
      %s730 = int_to_ptr.vmem [resolvable:$true] %s729
      %735 = dma.vmem_to_hbm [thread:$0]  %s730, 512, %s4, [#allocation7], 256, 256, 16
    $region25: #{tpu_custom_call.1} parent=1 // pred_fallthru
      _
    // Predicated region
    $region26: #{tpu_custom_call.1} parent=1 // pred_check
      _
    $region27: #{tpu_custom_call.1} parent=1 // pred_check_branch
      %737 = sbr.rel (0) target = $region29
    $region28: #{tpu_custom_call.1} parent=1 // pred_region
      %738 = dma.done [#allocation7], 512
    $region29: #{tpu_custom_call.1} parent=1 // pred_fallthru
      _
    %739 = vsyncpa [#allocation6], 1
    %740 = vsyncpa [#allocation7], 1

</llo_original>
